<compile_context>
chip_gen: v6e
topology: v6e:2x2x1
jax: 0.10.0
libtpu: 0.0.40
codegen_flags: <defaults>
</compile_context>

<pallas_src>
import functools
import math

import jax
import jax.numpy as jnp
from jax.experimental import pallas as pl
from jax.experimental.pallas import tpu as pltpu


_LANE = 512            # lane-dense slab width (multiple of 128)
_MAX_TILE_ROWS = 256   # 256 x 512 f32 tile = 512 KiB per input
_LN2 = float(math.log(2.0))  # BCE contribution of one zero-padded element


def _round_up(x, m):
    return ((x + m - 1) // m) * m


# --------------------------------------------------------------------------------------
# Kernel 1: streaming BCE-with-logits partial sums
# --------------------------------------------------------------------------------------
def _bce_partial_kernel(x_ref, y_ref, part_ref):
    """One (tile_rows, LANE) tile of logits/targets -> accumulate into (8, LANE) block."""
    @pl.when(pl.program_id(1) == 0)
    def _():
        part_ref[...] = jnp.zeros_like(part_ref)

    x = x_ref[...].astype(jnp.float32)
    y = y_ref[...].astype(jnp.float32)
    # numerically stable BCE-with-logits: max(x, 0) - x*y + log1p(exp(-|x|))
    bce = jnp.maximum(x, 0.0) - x * y + jnp.log1p(jnp.exp(-jnp.abs(x)))

    r, l = bce.shape  # static block shape; r is a multiple of 8, l a multiple of 128
    # Fold sublane-groups with pure vreg-aligned VPU adds (no per-tile XLU reduce);
    # the single cross-lane reduction is deferred to the finalize kernel.
    folded = bce[0:8, :]
    for g in range(1, r // 8):
        folded = folded + bce[g * 8:(g + 1) * 8, :]
    part_ref[...] += folded


def _bce_partial_sums(out, groundtrue):
    """Returns ((nsplit, 8, LANE) partial sums, n_pad)."""
    total = int(out.size)
    rows = -(-total // _LANE)

    if rows <= _MAX_TILE_ROWS:
        tile_rows = max(8, _round_up(rows, 8))
        nsplit = 1
    else:
        tile_rows = _MAX_TILE_ROWS
        # split across the 2 TensorCores of a v7x chip once there is enough work
        nsplit = 2 if rows >= 2 * _MAX_TILE_ROWS else 1

    rows_padded = _round_up(rows, tile_rows * nsplit)
    tiles_per_split = rows_padded // (tile_rows * nsplit)
    n_pad = rows_padded * _LANE - total

    def as_slab(a):
        flat = a.reshape(-1)
        if n_pad:
            # zero padding: each pad element contributes exactly log(2); corrected later
            flat = jnp.pad(flat, (0, n_pad))
        return flat.reshape(rows_padded, _LANE)

    x2d = as_slab(out)
    y2d = as_slab(groundtrue)

    in_spec = pl.BlockSpec((tile_rows, _LANE),
                           lambda i, k: (i * tiles_per_split + k, 0))
    out_spec = pl.BlockSpec((None, 8, _LANE), lambda i, k: (i, 0, 0))

    in_bytes = (x2d.size * x2d.dtype.itemsize + y2d.size * y2d.dtype.itemsize)
    cost = pl.CostEstimate(
        flops=6 * total,
        transcendentals=2 * total,
        bytes_accessed=in_bytes + nsplit * 8 * _LANE * 4,
    )
    tile_bytes = tile_rows * _LANE * (x2d.dtype.itemsize + y2d.dtype.itemsize)
    vmem_limit = min(64 << 20, max(16 << 20, 4 * tile_bytes + (4 << 20)))

    partials = pl.pallas_call(
        _bce_partial_kernel,
        out_shape=jax.ShapeDtypeStruct((nsplit, 8, _LANE), jnp.float32),
        grid=(nsplit, tiles_per_split),
        in_specs=[in_spec, in_spec],
        out_specs=out_spec,
        compiler_params=pltpu.CompilerParams(
            dimension_semantics=("parallel", "arbitrary"),
            vmem_limit_bytes=vmem_limit),
        cost_estimate=cost,
    )(x2d, y2d)
    return partials, n_pad


# --------------------------------------------------------------------------------------
# Kernel 2: finalize (tiny) -- cross-lane reduce of partials, KL term, scalar combine
# --------------------------------------------------------------------------------------
def _finalize_kernel(part_ref, mu_ref, v_ref, loss_ref, *,
                     n_recon, n_pad, n_kld_batch, beta):
    total = jnp.sum(part_ref[...])
    recon = (total - jnp.float32(n_pad) * jnp.float32(_LN2)) / jnp.float32(n_recon)

    mu = mu_ref[...].astype(jnp.float32)
    v = v_ref[...].astype(jnp.float32)
    # -0.5 * sum(1 + v - mu^2 - exp(v), dim=(-2,-1)) then mean over leading dims
    kld = (-0.5) * jnp.sum(1.0 + v - mu * mu - jnp.exp(v)) / jnp.float32(n_kld_batch)

    loss_ref[0, 0] = recon + jnp.float32(beta) * kld


def _finalize_recon_only_kernel(part_ref, loss_ref, *, n_recon, n_pad):
    total = jnp.sum(part_ref[...])
    loss_ref[0, 0] = (total - jnp.float32(n_pad) * jnp.float32(_LN2)) / jnp.float32(n_recon)


# --------------------------------------------------------------------------------------
# Public wrapper: mirrors CustomLoss.forward(output, groundtrue)
# --------------------------------------------------------------------------------------
def custom_loss(output, groundtrue, *, beta=0.0, recon_input_dtype=None):
    """Pallas equivalent of CustomLoss.forward(output, groundtrue).

    output = (out_logits, mu, logvar). If logvar is a Python int (no VAE head),
    only the reconstruction loss is computed (beta * kld contributes nothing),
    matching the PyTorch `type(v) is not int` branch.

    recon_input_dtype: optionally cast the streamed logits/targets (e.g. jnp.bfloat16)
    to halve HBM traffic of the memory-bound reconstruction kernel; accumulation
    stays in f32.
    """
    out, mu, v = output[0], output[1], output[2]
    n_recon = int(out.size)

    x_in, y_in = out, groundtrue
    if recon_input_dtype is not None:
        x_in = x_in.astype(recon_input_dtype)
        y_in = y_in.astype(recon_input_dtype)

    partials, n_pad = _bce_partial_sums(x_in, y_in)

    if isinstance(v, int):
        kernel = functools.partial(_finalize_recon_only_kernel,
                                   n_recon=n_recon, n_pad=n_pad)
        res = pl.pallas_call(
            kernel,
            out_shape=jax.ShapeDtypeStruct((1, 1), jnp.float32),
            in_specs=[pl.BlockSpec(memory_space=pltpu.MemorySpace.VMEM)],
            out_specs=pl.BlockSpec(memory_space=pltpu.MemorySpace.SMEM),
        )(partials)
        return res[0, 0]

    # torch: sum over (-2,-1), then mean over the remaining leading dims
    n_kld_batch = 1
    for d in mu.shape[:-2]:
        n_kld_batch *= int(d)
    n_kld_batch = max(n_kld_batch, 1)

    kernel = functools.partial(_finalize_kernel, n_recon=n_recon, n_pad=n_pad,
                               n_kld_batch=n_kld_batch, beta=float(beta))
    res = pl.pallas_call(
        kernel,
        out_shape=jax.ShapeDtypeStruct((1, 1), jnp.float32),
        in_specs=[pl.BlockSpec(memory_space=pltpu.MemorySpace.VMEM)] * 3,
        out_specs=pl.BlockSpec(memory_space=pltpu.MemorySpace.SMEM),
    )(partials, mu, v)
    return res[0, 0]


# --------------------------------------------------------------------------------------
# Reference (pure jnp) + demo
# --------------------------------------------------------------------------------------
def _reference_loss(out, gt, mu, v, beta):
    x = out.astype(jnp.float32)
    y = gt.astype(jnp.float32)
    bce = jnp.maximum(x, 0.0) - x * y + jnp.log1p(jnp.exp(-jnp.abs(x)))
    recon = jnp.mean(bce)
    kld = -0.5 * jnp.sum(1.0 + v - mu ** 2 - jnp.exp(v), axis=(-2, -1))
    return recon + beta * jnp.mean(kld)


def _reference_recon_only(out, gt):
    x = out.astype(jnp.float32)
    y = gt.astype(jnp.float32)
    bce = jnp.maximum(x, 0.0) - x * y + jnp.log1p(jnp.exp(-jnp.abs(x)))
    return jnp.mean(bce)


if __name__ == "__main__":
    key = jax.random.PRNGKey(0)
    k1, k2, k3, k4 = jax.random.split(key, 4)

    B, C, H, W = 2, 4, 16, 16       # reconstruction logits / targets (NCHW)
    LH, LW = 8, 32                  # latent (mu / logvar); KLD sums over last 2 dims

    out_logits = jax.random.normal(k1, (B, C, H, W), dtype=jnp.float32)
    groundtrue = (jax.random.uniform(k2, (B, C, H, W)) > 0.5).astype(jnp.float32)
    mu = 0.1 * jax.random.normal(k3, (B, LH, LW), dtype=jnp.float32)
    logvar = 0.1 * jax.random.normal(k4, (B, LH, LW), dtype=jnp.float32)

    beta = 0.5

    # full path (recon + beta * KL)
    loss = jax.block_until_ready(
        custom_loss((out_logits, mu, logvar), groundtrue, beta=beta))
    ref = _reference_loss(out_logits, groundtrue, mu, logvar, beta)
    assert jnp.allclose(loss, ref, rtol=1e-5, atol=1e-5), (loss, ref)

    # "v is int" (no-VAE) branch: beta * kld contributes nothing
    loss_no_kld = jax.block_until_ready(
        custom_loss((out_logits, 0, 0), groundtrue, beta=beta))
    ref_no_kld = _reference_recon_only(out_logits, groundtrue)
    assert jnp.allclose(loss_no_kld, ref_no_kld, rtol=1e-5, atol=1e-5), (loss_no_kld, ref_no_kld)

    # optional bf16 streaming path (halves HBM traffic; looser tolerance)
    loss_bf16 = jax.block_until_ready(
        custom_loss((out_logits, mu, logvar), groundtrue, beta=beta,
                    recon_input_dtype=jnp.bfloat16))
    assert jnp.isfinite(loss_bf16)
    assert jnp.allclose(loss_bf16, ref, rtol=5e-2, atol=5e-2), (loss_bf16, ref)

    print("KERNEL_OK")
</pallas_src>

<mosaic_0001>
module attributes {stable_mosaic.version = 11 : i64} {
  func.func @_bce_partial_kernel(%arg0: i32, %arg1: i32, %arg2: memref<8x512xf32, #tpu.memory_space<vmem>>, %arg3: memref<8x512xf32, #tpu.memory_space<vmem>>, %arg4: memref<1x8x512xf32, #tpu.memory_space<vmem>>) attributes {dimension_semantics = [#tpu.dimension_semantics<parallel>, #tpu.dimension_semantics<arbitrary>], iteration_bounds = array<i64: 1, 1>, scalar_prefetch = 0 : i64, scratch_operands = 0 : i64, tpu.core_type = #tpu.core_type<tc>, window_params = [{transform_indices = @transform_0, window_bounds = array<i64: 8, 512>}, {transform_indices = @transform_1, window_bounds = array<i64: 8, 512>}, {transform_indices = @transform_2, window_bounds = array<i64: 1, 8, 512>}]} {
    %c0_i32 = arith.constant 0 : i32
    %0 = arith.cmpi eq, %arg1, %c0_i32 : i32
    %1 = arith.extui %0 : i1 to i32
    %c0_i32_0 = arith.constant 0 : i32
    %2 = arith.cmpi ne, %1, %c0_i32_0 : i32
    scf.if %2 {
      %cst_11 = arith.constant 0.000000e+00 : f32
      %21 = vector.broadcast %cst_11 : f32 to vector<8x512xf32>
      %c0_12 = arith.constant 0 : index
      %c0_13 = arith.constant 0 : index
      %c0_14 = arith.constant 0 : index
      %22 = vector.load %arg4[%c0_12, %c0_13, %c0_14] : memref<1x8x512xf32, #tpu.memory_space<vmem>>, vector<1x8x512xf32>
      %23 = vector.shape_cast %22 : vector<1x8x512xf32> to vector<8x512xf32>
      %24 = vector.shape_cast %21 : vector<8x512xf32> to vector<1x8x512xf32>
      tpu.vector_store %arg4[%c0_12, %c0_13, %c0_14], %24 {strides = array<i32>} : memref<1x8x512xf32, #tpu.memory_space<vmem>>, vector<1x8x512xf32>,
    } else {
    }
    %c0 = arith.constant 0 : index
    %c0_1 = arith.constant 0 : index
    %3 = vector.load %arg2[%c0, %c0_1] : memref<8x512xf32, #tpu.memory_space<vmem>>, vector<8x512xf32>
    %c0_2 = arith.constant 0 : index
    %c0_3 = arith.constant 0 : index
    %4 = vector.load %arg3[%c0_2, %c0_3] : memref<8x512xf32, #tpu.memory_space<vmem>>, vector<8x512xf32>
    %cst = arith.constant 0.000000e+00 : f32
    %5 = vector.broadcast %cst : f32 to vector<8x512xf32>
    %6 = arith.maximumf %3, %5 : vector<8x512xf32>
    %7 = arith.mulf %3, %4 : vector<8x512xf32>
    %8 = arith.subf %6, %7 : vector<8x512xf32>
    %9 = math.absf %3 : vector<8x512xf32>
    %cst_4 = arith.constant 0.000000e+00 : f32
    %10 = vector.broadcast %cst_4 : f32 to vector<8x512xf32>
    %11 = arith.subf %10, %9 : vector<8x512xf32>
    %12 = math.exp %11 : vector<8x512xf32>
    %13 = math.log1p %12 : vector<8x512xf32>
    %14 = arith.addf %8, %13 : vector<8x512xf32>
    %c0_5 = arith.constant 0 : index
    %c0_6 = arith.constant 0 : index
    %c0_7 = arith.constant 0 : index
    %15 = vector.load %arg4[%c0_5, %c0_6, %c0_7] : memref<1x8x512xf32, #tpu.memory_space<vmem>>, vector<1x8x512xf32>
    %16 = vector.shape_cast %15 : vector<1x8x512xf32> to vector<8x512xf32>
    %17 = arith.addf %16, %14 : vector<8x512xf32>
    %c0_8 = arith.constant 0 : index
    %c0_9 = arith.constant 0 : index
    %c0_10 = arith.constant 0 : index
    %18 = vector.load %arg4[%c0_8, %c0_9, %c0_10] : memref<1x8x512xf32, #tpu.memory_space<vmem>>, vector<1x8x512xf32>
    %19 = vector.shape_cast %18 : vector<1x8x512xf32> to vector<8x512xf32>
    %20 = vector.shape_cast %17 : vector<8x512xf32> to vector<1x8x512xf32>
    tpu.vector_store %arg4[%c0_8, %c0_9, %c0_10], %20 {strides = array<i32>} : memref<1x8x512xf32, #tpu.memory_space<vmem>>, vector<1x8x512xf32>,
    return
  }
  func.func @transform_0(%arg0: i32, %arg1: i32) -> (i32, i32) {
    %c1_i32 = arith.constant 1 : i32
    %0 = arith.muli %arg0, %c1_i32 : i32
    %1 = arith.addi %0, %arg1 : i32
    %c0_i32 = arith.constant 0 : i32
    %c0_i32_0 = arith.constant 0 : i32
    return %1, %c0_i32 : i32, i32
  }
  func.func @transform_1(%arg0: i32, %arg1: i32) -> (i32, i32) {
    %c1_i32 = arith.constant 1 : i32
    %0 = arith.muli %arg0, %c1_i32 : i32
    %1 = arith.addi %0, %arg1 : i32
    %c0_i32 = arith.constant 0 : i32
    %c0_i32_0 = arith.constant 0 : i32
    return %1, %c0_i32 : i32, i32
  }
  func.func @transform_2(%arg0: i32, %arg1: i32) -> (i32, i32, i32) {
    %c0_i32 = arith.constant 0 : i32
    %c0_i32_0 = arith.constant 0 : i32
    %c0_i32_1 = arith.constant 0 : i32
    return %arg0, %c0_i32, %c0_i32_0 : i32, i32, i32
  }
}

</mosaic_0001>

<llo_original>
// kernel: tpu_custom_call.1
$region0: #{tpu_custom_call.1}
  #allocation0 [shape = 'u32[]', space=smem, size = 0x4, offset = 0x4, fixed_abs, tag = 'smem constant byte address 0x4 - core index']
  #allocation1 [shape = 'u32[144,128]{1,0:T(1,128)}', space=vmem, size = 0x12000, scoped, tag = 'internal scratch']
  %s0 = inlined_call_operand.hbm [shape: f32[8,512], index: 0, kind: input, shape index: {}]
  %s1 = inlined_call_operand.hbm [shape: f32[8,512], index: 1, kind: input, shape index: {}]
  %s2 = inlined_call_operand.hbm [shape: f32[1,8,512], index: 2, kind: output, shape index: {}]
  %s3 = sld [smem:[#allocation0]]
  $region30: #{tpu_custom_call.1} parent=0
    _
  %s5 = ssub.s32 1, %s3
  %s6 = scalar_select 0, %s5, %s3
  $region1: #{tpu_custom_call.1} parent=0
    #allocation2 [shape = 'u8[16384]{0}', space=vmem, size = 0x4000, scoped, tag = 'input window, operand 0, single buffered']
    #allocation3 [shape = 's32[1]{0}', space=sflag, size = 0x4, scoped, tag = 'scoped memory for tpu_custom_call.1']
    #allocation4 [shape = 's32[1]{0}', space=sflag, size = 0x4, scoped, tag = 'scoped memory for tpu_custom_call.1']
    #allocation5 [shape = 'u8[16384]{0}', space=vmem, size = 0x4000, scoped, tag = 'input window, operand 1, single buffered']
    #allocation6 [shape = 's32[1]{0}', space=sflag, size = 0x4, scoped, tag = 'scoped memory for tpu_custom_call.1']
    #allocation7 [shape = 'u8[16384]{0}', space=vmem, size = 0x4000, scoped, tag = 'output window, operand 0, single buffered']
    %7 = vsyncpa [#allocation3], 0
    %8 = vsyncpa [#allocation6], 0
    %9 = vsyncpa [#allocation4], 0
    // Predicated region
    $region2: #{tpu_custom_call.1} parent=1 // pred_check
      _
    $region3: #{tpu_custom_call.1} parent=1 // pred_check_branch
      %11 = sbr.rel (0) target = $region5
    $region4: #{tpu_custom_call.1} parent=1 // pred_region
      %s12 = sadd.s32 0, 0
      %s14 = ssub.s32 512, 512
      %15 = vsyncadd [#allocation3], %s14
      %s16 = smul.addr %s12, 4
      %s17 = smul.addr %s16, 128
      %s18 = scalar_lea.hbm %s0, %s17
      %s20 = sshll.u32 [#allocation2], 4
      %s21 = int_to_ptr.vmem [resolvable:$true] %s20
      %23 = dma.hbm_to_vmem [thread:$0]  %s18, 512, %s21, [#allocation3]
    $region5: #{tpu_custom_call.1} parent=1 // pred_fallthru
      _
    // Predicated region
    $region6: #{tpu_custom_call.1} parent=1 // pred_check
      _
    $region7: #{tpu_custom_call.1} parent=1 // pred_check_branch
      %25 = sbr.rel (0) target = $region9
    $region8: #{tpu_custom_call.1} parent=1 // pred_region
      %s26 = sadd.s32 0, 0
      %s28 = ssub.s32 512, 512
      %29 = vsyncadd [#allocation6], %s28
      %s30 = smul.addr %s26, 4
      %s31 = smul.addr %s30, 128
      %s32 = scalar_lea.hbm %s1, %s31
      %s34 = sshll.u32 [#allocation5], 4
      %s35 = int_to_ptr.vmem [resolvable:$true] %s34
      %37 = dma.hbm_to_vmem [thread:$0]  %s32, 512, %s35, [#allocation6]
    $region9: #{tpu_custom_call.1} parent=1 // pred_fallthru
      _
    // Predicated region
    $region10: #{tpu_custom_call.1} parent=1 // pred_check
      _
    $region11: #{tpu_custom_call.1} parent=1 // pred_check_branch
      %39 = sbr.rel (0) target = $region13
    $region12: #{tpu_custom_call.1} parent=1 // pred_region
      %40 = dma.done [#allocation3], 512
    $region13: #{tpu_custom_call.1} parent=1 // pred_fallthru
      _
    // Predicated region
    $region14: #{tpu_custom_call.1} parent=1 // pred_check
      _
    $region15: #{tpu_custom_call.1} parent=1 // pred_check_branch
      %42 = sbr.rel (0) target = $region17
    $region16: #{tpu_custom_call.1} parent=1 // pred_region
      %43 = dma.done [#allocation6], 512
    $region17: #{tpu_custom_call.1} parent=1 // pred_fallthru
      _
    %s44 = sadd.s32 0, 0
    %s45 = sadd.s32 0, 0
    %p46 = scmp.eq.s32.totalorder 0, 0
    // Predicated region
    $region18: #{tpu_custom_call.1} parent=1 // pred_check
      %p47 = pneg %p46
    $region19: #{tpu_custom_call.1} parent=1 // pred_check_branch
      %49 = sbr.rel (%p47) target = $region21
    $region20: #{tpu_custom_call.1} parent=1 // pred_region
      %50 = vst [vmem:[#allocation7] sm:$0xff] 0.0
      %51 = vst [vmem:[#allocation7 + $0x8] sm:$0xff] 0.0
      %52 = vst [vmem:[#allocation7 + $0x10] sm:$0xff] 0.0
      %53 = vst [vmem:[#allocation7 + $0x18] sm:$0xff] 0.0
    $region21: #{tpu_custom_call.1} parent=1 // pred_fallthru
      _
    %v54 = vld [vmem:[#allocation2] sm:$0xff]
    %v55 = vld [vmem:[#allocation2 + $0x8] sm:$0xff]
    %v56 = vld [vmem:[#allocation2 + $0x10] sm:$0xff]
    %v57 = vld [vmem:[#allocation2 + $0x18] sm:$0xff]
    %v58 = vld [vmem:[#allocation5] sm:$0xff]
    %v59 = vld [vmem:[#allocation5 + $0x8] sm:$0xff]
    %v60 = vld [vmem:[#allocation5 + $0x10] sm:$0xff]
    %v61 = vld [vmem:[#allocation5 + $0x18] sm:$0xff]
    %v62 = vmax.f32 %v54, 0.0
    %v63 = vmax.f32 %v55, 0.0
    %v64 = vmax.f32 %v56, 0.0
    %v65 = vmax.f32 %v57, 0.0
    %v66 = vmul.f32 %v54, %v58
    %v67 = vmul.f32 %v55, %v59
    %v68 = vmul.f32 %v56, %v60
    %v69 = vmul.f32 %v57, %v61
    %v70 = vsub.f32 %v62, %v66
    %v71 = vsub.f32 %v63, %v67
    %v72 = vsub.f32 %v64, %v68
    %v73 = vsub.f32 %v65, %v69
    %v74 = vand.u32 2147483647, %v54
    %v75 = vand.u32 2147483647, %v55
    %v76 = vand.u32 2147483647, %v56
    %v77 = vand.u32 2147483647, %v57
    %v78 = vsub.f32 0.0, %v74
    %v79 = vsub.f32 0.0, %v75
    %v80 = vsub.f32 0.0, %v76
    %v81 = vsub.f32 0.0, %v77
    %v82 = vmul.f32 %v78, 1.442695
    %v83 = vpow.pop %v82
    %v84 = vmul.f32 %v79, 1.442695
    %v85 = vpow.pop %v84
    %v86 = vmul.f32 %v80, 1.442695
    %v87 = vpow.pop %v86
    %v88 = vmul.f32 %v81, 1.442695
    %v89 = vpow.pop %v88
    %v90 = vadd.f32 %v83, 1.0
    %v91 = vlog2.pop %v90
    %v92 = vmul.f32 %v91, 0.6931472
    %v93 = vmul.f32 -0.5, %v83
    %v94 = vadd.f32 %v93, 1.0
    %v95 = vmul.f32 %v94, %v83
    %v96 = vand.u32 2147483647, %v83
    %vm97 = vcmp.lt.f32.partialorder %v96, 0.0004427343
    %v98 = vsel %vm97, %v95, %v92
    %v99 = vadd.f32 %v85, 1.0
    %v100 = vlog2.pop %v99
    %v101 = vmul.f32 %v100, 0.6931472
    %v102 = vmul.f32 -0.5, %v85
    %v103 = vadd.f32 %v102, 1.0
    %v104 = vmul.f32 %v103, %v85
    %v105 = vand.u32 2147483647, %v85
    %vm106 = vcmp.lt.f32.partialorder %v105, 0.0004427343
    %v107 = vsel %vm106, %v104, %v101
    %v108 = vadd.f32 %v87, 1.0
    %v109 = vlog2.pop %v108
    %v110 = vmul.f32 %v109, 0.6931472
    %v111 = vmul.f32 -0.5, %v87
    %v112 = vadd.f32 %v111, 1.0
    %v113 = vmul.f32 %v112, %v87
    %v114 = vand.u32 2147483647, %v87
    %vm115 = vcmp.lt.f32.partialorder %v114, 0.0004427343
    %v116 = vsel %vm115, %v113, %v110
    %v117 = vadd.f32 %v89, 1.0
    %v118 = vlog2.pop %v117
    %v119 = vmul.f32 %v118, 0.6931472
    %v120 = vmul.f32 -0.5, %v89
    %v121 = vadd.f32 %v120, 1.0
    %v122 = vmul.f32 %v121, %v89
    %v123 = vand.u32 2147483647, %v89
    %vm124 = vcmp.lt.f32.partialorder %v123, 0.0004427343
    %v125 = vsel %vm124, %v122, %v119
    %v126 = vadd.f32 %v70, %v98
    %v127 = vadd.f32 %v71, %v107
    %v128 = vadd.f32 %v72, %v116
    %v129 = vadd.f32 %v73, %v125
    %v130 = vld [vmem:[#allocation7] sm:$0xff]
    %v131 = vld [vmem:[#allocation7 + $0x8] sm:$0xff]
    %v132 = vld [vmem:[#allocation7 + $0x10] sm:$0xff]
    %v133 = vld [vmem:[#allocation7 + $0x18] sm:$0xff]
    %v134 = vadd.f32 %v130, %v126
    %v135 = vadd.f32 %v131, %v127
    %v136 = vadd.f32 %v132, %v128
    %v137 = vadd.f32 %v133, %v129
    %138 = vst [vmem:[#allocation7] sm:$0xff] %v134
    %139 = vst [vmem:[#allocation7 + $0x8] sm:$0xff] %v135
    %140 = vst [vmem:[#allocation7 + $0x10] sm:$0xff] %v136
    %141 = vst [vmem:[#allocation7 + $0x18] sm:$0xff] %v137
    // Predicated region
    $region22: #{tpu_custom_call.1} parent=1 // pred_check
      _
    $region23: #{tpu_custom_call.1} parent=1 // pred_check_branch
      %143 = sbr.rel (0) target = $region25
    $region24: #{tpu_custom_call.1} parent=1 // pred_region
      %s145 = ssub.s32 512, 512
      %146 = vsyncadd [#allocation4], %s145
      %s148 = sshll.u32 [#allocation7], 4
      %s149 = int_to_ptr.vmem [resolvable:$true] %s148
      %151 = dma.vmem_to_hbm [thread:$0]  %s149, 512, %s2, [#allocation4]
    $region25: #{tpu_custom_call.1} parent=1 // pred_fallthru
      _
    // Predicated region
    $region26: #{tpu_custom_call.1} parent=1 // pred_check
      _
    $region27: #{tpu_custom_call.1} parent=1 // pred_check_branch
      %153 = sbr.rel (0) target = $region29
    $region28: #{tpu_custom_call.1} parent=1 // pred_region
      %154 = dma.done [#allocation4], 512
    $region29: #{tpu_custom_call.1} parent=1 // pred_fallthru
      _
    %155 = vsyncpa [#allocation3], 1
    %156 = vsyncpa [#allocation6], 1
    %157 = vsyncpa [#allocation4], 1

</llo_original>
